<compile_context>
chip_gen: v7x
topology: tpu7x:2x2x1
jax: 0.10.0
libtpu: 0.0.40
codegen_flags: <defaults>
</compile_context>

<pallas_src>
import functools
import math

import jax
import jax.numpy as jnp
from jax import lax
from jax.experimental import pallas as pl
from jax.experimental.pallas import tpu as pltpu


def _round_up(x, m):
    return (x + m - 1) // m * m


def _sublane_multiple(dtype):
    # vregs pack sub-32-bit dtypes along sublanes: f32 -> 8, bf16 -> 16, i8 -> 32.
    return {4: 8, 2: 16, 1: 32}.get(jnp.dtype(dtype).itemsize, 8)


def _default_vmem_limit_bytes():
    # Generation-aware scoped-VMEM budget (v5e/v6e: 128 MiB physical, v7x: 64 MiB).
    try:
        cap = pltpu.get_tpu_info().vmem_capacity_bytes
    except Exception:
        cap = 64 * 1024 * 1024
    return int(min(cap * 3 // 4, 96 * 1024 * 1024))


def _mlm_head_kernel(x_ref, w1_ref, b1_ref, g_ref, beta_ref, wd_ref, bd_ref,
                     o_ref, h_ref, *, eps):
    # x_ref:  (TN, H)   rows of sequence_output (flattened), compute dtype
    # w1_ref: (H, H)    dense weight, pre-transposed to (in, out)
    # b1_ref: (1, H)    dense bias (f32)
    # g_ref / beta_ref: (1, H)  LayerNorm gamma / beta (f32)
    # wd_ref: (H, TV)   decoder weight tile, pre-transposed to (in, out)
    # bd_ref: (1, TV)   decoder bias tile (f32)
    # o_ref:  (TN, TV)  logits tile
    # h_ref:  (TN, H)   VMEM scratch holding the transformed rows (compute dtype)
    j = pl.program_id(1)

    @pl.when(j == 0)
    def _transform():
        # dense: h = x @ W1 + b1   (natural [M,K]x[K,N] MXU feed, f32 accumulate)
        h = lax.dot_general(
            x_ref[...], w1_ref[...],
            dimension_numbers=(((1,), (0,)), ((), ())),
            preferred_element_type=jnp.float32,
        )
        h = h + b1_ref[...]
        # Exact erf GELU (HF hidden_act="gelu"); elementwise math kept in f32.
        h = 0.5 * h * (1.0 + lax.erf(h * (1.0 / math.sqrt(2.0))))
        # LayerNorm over the hidden dim.  Zero-padded rows get var=0 so they
        # reduce to h = beta: finite, and sliced off in the wrapper (benign).
        mean = jnp.mean(h, axis=-1, keepdims=True)
        cen = h - mean
        var = jnp.mean(cen * cen, axis=-1, keepdims=True)
        h = cen * lax.rsqrt(var + eps)
        h = h * g_ref[...] + beta_ref[...]
        h_ref[...] = h.astype(h_ref.dtype)

    # decoder: logits = h @ Wd + bd for this vocab tile (f32 accumulate)
    logits = lax.dot_general(
        h_ref[...], wd_ref[...],
        dimension_numbers=(((1,), (0,)), ((), ())),
        preferred_element_type=jnp.float32,
    )
    o_ref[...] = (logits + bd_ref[...]).astype(o_ref.dtype)


def prepare_mlm_head_params(dense_w, dense_b, ln_gamma, ln_beta, decoder_w,
                            decoder_b, *, vocab_tile=512, compute_dtype=None):
    """One-time parameter prep, hoisted off the forward path.

    dense_w: (H, H), decoder_w: (V, H)  -- PyTorch (out, in) layout.
    Transposes weights to K-major (in, out), pads the vocab dim to a tile
    multiple, and optionally casts the matmul operands to `compute_dtype`
    (e.g. bf16 for MXU peak on v6e/v7x).  LN params / biases stay f32.
    """
    H = dense_w.shape[1]
    V = decoder_w.shape[0]
    assert dense_w.shape == (H, H) and decoder_w.shape == (V, H)
    assert dense_b.shape == (H,) and ln_gamma.shape == (H,) and ln_beta.shape == (H,)
    assert decoder_b.shape == (V,)

    cdt = jnp.dtype(compute_dtype) if compute_dtype is not None else None

    TV = min(_round_up(vocab_tile, 128), _round_up(V, 128))
    Vp = _round_up(V, TV)

    w1_t = jnp.asarray(dense_w).T                      # (H_in, H_out)
    wd_t = jnp.asarray(decoder_w).T                    # (H, V)  K-major
    bd = jnp.asarray(decoder_b, jnp.float32)
    if Vp != V:
        wd_t = jnp.pad(wd_t, ((0, 0), (0, Vp - V)))
        bd = jnp.pad(bd, (0, Vp - V))
    if cdt is not None:
        w1_t = w1_t.astype(cdt)
        wd_t = wd_t.astype(cdt)

    return dict(
        w1_t=w1_t,
        b1=jnp.asarray(dense_b, jnp.float32).reshape(1, H),
        gamma=jnp.asarray(ln_gamma, jnp.float32).reshape(1, H),
        beta=jnp.asarray(ln_beta, jnp.float32).reshape(1, H),
        wd_t=wd_t,
        bd=bd.reshape(1, Vp),
        H=H, V=V, Vp=Vp, TV=TV,
        compute_dtype=cdt,
    )


def bert_only_mlm_head(sequence_output, params, *, layer_norm_eps=1e-12,
                       row_tile=512, vmem_limit_bytes=None):
    """BertOnlyMLMHead forward.  sequence_output: (..., H) -> (..., V)."""
    orig_shape = sequence_output.shape
    H, V, Vp, TV = params["H"], params["V"], params["Vp"], params["TV"]
    assert orig_shape[-1] == H

    out_dtype = sequence_output.dtype
    cdt = params["compute_dtype"]
    if cdt is None:
        cdt = jnp.dtype(out_dtype)

    x = sequence_output.reshape(-1, H)
    if x.dtype != cdt:
        x = x.astype(cdt)
    N = x.shape[0]

    sub = _sublane_multiple(cdt)
    TN = min(_round_up(row_tile, sub), _round_up(N, sub))
    # Keep at least 2 row tiles (when N allows) so the "parallel" row axis can
    # feed both TensorCores on v7x.
    if N > sub and pl.cdiv(_round_up(N, sub), TN) < 2:
        TN = max(sub, _round_up(pl.cdiv(N, 2), sub))
    Np = _round_up(N, TN)
    if Np != N:
        x = jnp.pad(x, ((0, Np - N), (0, 0)))

    grid = (Np // TN, Vp // TV)
    isz = jnp.dtype(cdt).itemsize
    cost = pl.CostEstimate(
        flops=2 * Np * H * H + 2 * Np * H * Vp,
        transcendentals=Np * H,
        bytes_accessed=(Np * H + H * H + 3 * H) * isz
        + grid[0] * H * Vp * isz                      # decoder W re-streamed per row tile
        + Np * Vp * jnp.dtype(out_dtype).itemsize,    # logits write
    )

    if vmem_limit_bytes is None:
        vmem_limit_bytes = _default_vmem_limit_bytes()

    out = pl.pallas_call(
        functools.partial(_mlm_head_kernel, eps=layer_norm_eps),
        out_shape=jax.ShapeDtypeStruct((Np, Vp), out_dtype),
        grid_spec=pltpu.PrefetchScalarGridSpec(
            num_scalar_prefetch=0,
            grid=grid,
            in_specs=[
                pl.BlockSpec((TN, H), lambda i, j: (i, 0)),   # x rows (resident over j)
                pl.BlockSpec((H, H), lambda i, j: (0, 0)),    # dense W^T (resident)
                pl.BlockSpec((1, H), lambda i, j: (0, 0)),    # dense bias
                pl.BlockSpec((1, H), lambda i, j: (0, 0)),    # LN gamma
                pl.BlockSpec((1, H), lambda i, j: (0, 0)),    # LN beta
                pl.BlockSpec((H, TV), lambda i, j: (0, j)),   # decoder W^T tile (streamed)
                pl.BlockSpec((1, TV), lambda i, j: (0, j)),   # decoder bias tile
            ],
            out_specs=pl.BlockSpec((TN, TV), lambda i, j: (i, j)),
            scratch_shapes=[pltpu.VMEM((TN, H), cdt)],
        ),
        compiler_params=pltpu.CompilerParams(
            dimension_semantics=("parallel", "arbitrary"),
            vmem_limit_bytes=vmem_limit_bytes,
        ),
        cost_estimate=cost,
    )(x, params["w1_t"], params["b1"], params["gamma"], params["beta"],
      params["wd_t"], params["bd"])

    out = out[:N, :V]
    return out.reshape(*orig_shape[:-1], V)


if __name__ == "__main__":
    # Small shapes consistent with the module: batch=2, seq=8, hidden=32, vocab=512.
    B, S, H, V = 2, 8, 32, 512
    eps = 1e-12

    key = jax.random.PRNGKey(0)
    ks = jax.random.split(key, 7)
    seq_out = jax.random.normal(ks[0], (B, S, H), dtype=jnp.float32)
    dense_w = jax.random.normal(ks[1], (H, H), dtype=jnp.float32) * 0.02
    dense_b = jax.random.normal(ks[2], (H,), dtype=jnp.float32) * 0.02
    ln_g = 1.0 + 0.1 * jax.random.normal(ks[3], (H,), dtype=jnp.float32)
    ln_b = 0.1 * jax.random.normal(ks[4], (H,), dtype=jnp.float32)
    dec_w = jax.random.normal(ks[5], (V, H), dtype=jnp.float32) * 0.02
    dec_b = jax.random.normal(ks[6], (V,), dtype=jnp.float32) * 0.02

    # Pure-JAX reference (exact erf GELU, matching HF hidden_act="gelu").
    xr = seq_out.reshape(-1, H)
    hr = xr @ dense_w.T + dense_b
    hr = 0.5 * hr * (1.0 + lax.erf(hr * (1.0 / math.sqrt(2.0))))
    mean = hr.mean(-1, keepdims=True)
    var = ((hr - mean) ** 2).mean(-1, keepdims=True)
    hr = (hr - mean) / jnp.sqrt(var + eps) * ln_g + ln_b
    ref = (hr @ dec_w.T + dec_b).reshape(B, S, V)

    # f32 datapath (exact check).
    params_f32 = prepare_mlm_head_params(dense_w, dense_b, ln_g, ln_b, dec_w, dec_b,
                                         vocab_tile=512)
    out = bert_only_mlm_head(seq_out, params_f32, layer_norm_eps=eps)
    out = jax.block_until_ready(out)
    assert out.shape == (B, S, V)
    err = float(jnp.abs(out - ref).max())
    assert jnp.allclose(out, ref, atol=1e-4, rtol=1e-4), err

    # bf16 MXU datapath (elementwise stays f32); loose tolerance vs f32 reference.
    params_bf16 = prepare_mlm_head_params(dense_w, dense_b, ln_g, ln_b, dec_w, dec_b,
                                          vocab_tile=512,
                                          compute_dtype=jnp.bfloat16)
    out_bf16 = bert_only_mlm_head(seq_out, params_bf16, layer_norm_eps=eps)
    out_bf16 = jax.block_until_ready(out_bf16)
    assert out_bf16.shape == (B, S, V)
    err_bf16 = float(jnp.abs(out_bf16.astype(jnp.float32) - ref).max())
    assert err_bf16 < 0.1, err_bf16

    print("KERNEL_OK")
</pallas_src>

<mosaic_0001>
module attributes {stable_mosaic.version = 11 : i64} {
  func.func @_mlm_head_kernel(%arg0: i32, %arg1: i32, %arg2: memref<8x32xf32, #tpu.memory_space<vmem>>, %arg3: memref<32x32xf32, #tpu.memory_space<vmem>>, %arg4: memref<1x32xf32, #tpu.memory_space<vmem>>, %arg5: memref<1x32xf32, #tpu.memory_space<vmem>>, %arg6: memref<1x32xf32, #tpu.memory_space<vmem>>, %arg7: memref<32x512xf32, #tpu.memory_space<vmem>>, %arg8: memref<1x512xf32, #tpu.memory_space<vmem>>, %arg9: memref<8x512xf32, #tpu.memory_space<vmem>>, %arg10: memref<8x32xf32, #tpu.memory_space<vmem>>) attributes {dimension_semantics = [#tpu.dimension_semantics<parallel>, #tpu.dimension_semantics<arbitrary>], iteration_bounds = array<i64: 2, 1>, scalar_prefetch = 0 : i64, scratch_operands = 1 : i64, tpu.core_type = #tpu.core_type<tc>, window_params = [{transform_indices = @transform_0, window_bounds = array<i64: 8, 32>}, {pipeline_mode = #tpu.pipeline_mode<synchronous>, transform_indices = @transform_1, window_bounds = array<i64: 32, 32>}, {pipeline_mode = #tpu.pipeline_mode<synchronous>, transform_indices = @transform_2, window_bounds = array<i64: 1, 32>}, {pipeline_mode = #tpu.pipeline_mode<synchronous>, transform_indices = @transform_3, window_bounds = array<i64: 1, 32>}, {pipeline_mode = #tpu.pipeline_mode<synchronous>, transform_indices = @transform_4, window_bounds = array<i64: 1, 32>}, {transform_indices = @transform_5, window_bounds = array<i64: 32, 512>}, {transform_indices = @transform_6, window_bounds = array<i64: 1, 512>}, {transform_indices = @transform_7, window_bounds = array<i64: 8, 512>}]} {
    %c0_i32 = arith.constant 0 : i32
    %0 = arith.cmpi eq, %arg1, %c0_i32 : i32
    %1 = arith.extui %0 : i1 to i32
    %c0_i32_0 = arith.constant 0 : i32
    %2 = arith.cmpi ne, %1, %c0_i32_0 : i32
    scf.if %2 {
      %c0_8 = arith.constant 0 : index
      %c0_9 = arith.constant 0 : index
      %10 = vector.load %arg2[%c0_8, %c0_9] : memref<8x32xf32, #tpu.memory_space<vmem>>, vector<8x32xf32>
      %c0_10 = arith.constant 0 : index
      %c0_11 = arith.constant 0 : index
      %11 = vector.load %arg3[%c0_10, %c0_11] : memref<32x32xf32, #tpu.memory_space<vmem>>, vector<32x32xf32>
      %cst_12 = arith.constant dense<0.000000e+00> : vector<8x32xf32>
      %12 = tpu.matmul %10, %11, %cst_12 {dimension_numbers = #tpu.dot_dimension_numbers<[1], [0], [0], [1], [0, 0, 1, 1], [], []>} : vector<8x32xf32>, vector<32x32xf32>, vector<8x32xf32> -> vector<8x32xf32>
      %c0_13 = arith.constant 0 : index
      %c0_14 = arith.constant 0 : index
      %13 = vector.load %arg4[%c0_13, %c0_14] : memref<1x32xf32, #tpu.memory_space<vmem>>, vector<1x32xf32>
      %14 = vector.broadcast %13 : vector<1x32xf32> to vector<8x32xf32>
      %15 = arith.addf %12, %14 : vector<8x32xf32>
      %cst_15 = arith.constant 5.000000e-01 : f32
      %16 = vector.broadcast %cst_15 : f32 to vector<8x32xf32>
      %17 = arith.mulf %16, %15 : vector<8x32xf32>
      %cst_16 = arith.constant 0.707106769 : f32
      %18 = vector.broadcast %cst_16 : f32 to vector<8x32xf32>
      %19 = arith.mulf %15, %18 : vector<8x32xf32>
      %20 = math.erf %19 : vector<8x32xf32>
      %cst_17 = arith.constant 1.000000e+00 : f32
      %21 = vector.broadcast %cst_17 : f32 to vector<8x32xf32>
      %22 = arith.addf %21, %20 : vector<8x32xf32>
      %23 = arith.mulf %17, %22 : vector<8x32xf32>
      %cst_18 = arith.constant dense<0.000000e+00> : vector<8xf32>
      %24 = vector.multi_reduction <add>, %23, %cst_18 [1] : vector<8x32xf32> to vector<8xf32>
      %25 = vector.shape_cast %24 : vector<8xf32> to vector<8x1xf32>
      %cst_19 = arith.constant 3.200000e+01 : f32
      %26 = vector.broadcast %cst_19 : f32 to vector<8x1xf32>
      %27 = arith.divf %25, %26 : vector<8x1xf32>
      %28 = vector.broadcast %27 : vector<8x1xf32> to vector<8x32xf32>
      %29 = arith.subf %23, %28 : vector<8x32xf32>
      %30 = arith.mulf %29, %29 : vector<8x32xf32>
      %cst_20 = arith.constant dense<0.000000e+00> : vector<8xf32>
      %31 = vector.multi_reduction <add>, %30, %cst_20 [1] : vector<8x32xf32> to vector<8xf32>
      %32 = vector.shape_cast %31 : vector<8xf32> to vector<8x1xf32>
      %cst_21 = arith.constant 3.200000e+01 : f32
      %33 = vector.broadcast %cst_21 : f32 to vector<8x1xf32>
      %34 = arith.divf %32, %33 : vector<8x1xf32>
      %cst_22 = arith.constant 9.99999996E-13 : f32
      %35 = vector.broadcast %cst_22 : f32 to vector<8x1xf32>
      %36 = arith.addf %34, %35 : vector<8x1xf32>
      %37 = math.rsqrt %36 : vector<8x1xf32>
      %38 = vector.broadcast %37 : vector<8x1xf32> to vector<8x32xf32>
      %39 = arith.mulf %29, %38 : vector<8x32xf32>
      %c0_23 = arith.constant 0 : index
      %c0_24 = arith.constant 0 : index
      %40 = vector.load %arg5[%c0_23, %c0_24] : memref<1x32xf32, #tpu.memory_space<vmem>>, vector<1x32xf32>
      %41 = vector.broadcast %40 : vector<1x32xf32> to vector<8x32xf32>
      %42 = arith.mulf %39, %41 : vector<8x32xf32>
      %c0_25 = arith.constant 0 : index
      %c0_26 = arith.constant 0 : index
      %43 = vector.load %arg6[%c0_25, %c0_26] : memref<1x32xf32, #tpu.memory_space<vmem>>, vector<1x32xf32>
      %44 = vector.broadcast %43 : vector<1x32xf32> to vector<8x32xf32>
      %45 = arith.addf %42, %44 : vector<8x32xf32>
      %c0_27 = arith.constant 0 : index
      %c0_28 = arith.constant 0 : index
      %46 = vector.load %arg10[%c0_27, %c0_28] : memref<8x32xf32, #tpu.memory_space<vmem>>, vector<8x32xf32>
      tpu.vector_store %arg10[%c0_27, %c0_28], %45 {strides = array<i32>} : memref<8x32xf32, #tpu.memory_space<vmem>>, vector<8x32xf32>,
    } else {
    }
    %c0 = arith.constant 0 : index
    %c0_1 = arith.constant 0 : index
    %3 = vector.load %arg10[%c0, %c0_1] : memref<8x32xf32, #tpu.memory_space<vmem>>, vector<8x32xf32>
    %c0_2 = arith.constant 0 : index
    %c0_3 = arith.constant 0 : index
    %4 = vector.load %arg7[%c0_2, %c0_3] : memref<32x512xf32, #tpu.memory_space<vmem>>, vector<32x512xf32>
    %cst = arith.constant dense<0.000000e+00> : vector<8x512xf32>
    %5 = tpu.matmul %3, %4, %cst {dimension_numbers = #tpu.dot_dimension_numbers<[1], [0], [0], [1], [0, 0, 1, 1], [], []>} : vector<8x32xf32>, vector<32x512xf32>, vector<8x512xf32> -> vector<8x512xf32>
    %c0_4 = arith.constant 0 : index
    %c0_5 = arith.constant 0 : index
    %6 = vector.load %arg8[%c0_4, %c0_5] : memref<1x512xf32, #tpu.memory_space<vmem>>, vector<1x512xf32>
    %7 = vector.broadcast %6 : vector<1x512xf32> to vector<8x512xf32>
    %8 = arith.addf %5, %7 : vector<8x512xf32>
    %c0_6 = arith.constant 0 : index
    %c0_7 = arith.constant 0 : index
    %9 = vector.load %arg9[%c0_6, %c0_7] : memref<8x512xf32, #tpu.memory_space<vmem>>, vector<8x512xf32>
    tpu.vector_store %arg9[%c0_6, %c0_7], %8 {strides = array<i32>} : memref<8x512xf32, #tpu.memory_space<vmem>>, vector<8x512xf32>,
    return
  }
  func.func @transform_0(%arg0: i32, %arg1: i32) -> (i32, i32) {
    %c0_i32 = arith.constant 0 : i32
    %c0_i32_0 = arith.constant 0 : i32
    return %arg0, %c0_i32 : i32, i32
  }
  func.func @transform_1(%arg0: i32, %arg1: i32) -> (i32, i32) {
    %c0_i32 = arith.constant 0 : i32
    %c0_i32_0 = arith.constant 0 : i32
    %c0_i32_1 = arith.constant 0 : i32
    return %c0_i32, %c0_i32_0 : i32, i32
  }
  func.func @transform_2(%arg0: i32, %arg1: i32) -> (i32, i32) {
    %c0_i32 = arith.constant 0 : i32
    %c0_i32_0 = arith.constant 0 : i32
    %c0_i32_1 = arith.constant 0 : i32
    return %c0_i32, %c0_i32_0 : i32, i32
  }
  func.func @transform_3(%arg0: i32, %arg1: i32) -> (i32, i32) {
    %c0_i32 = arith.constant 0 : i32
    %c0_i32_0 = arith.constant 0 : i32
    %c0_i32_1 = arith.constant 0 : i32
    return %c0_i32, %c0_i32_0 : i32, i32
  }
  func.func @transform_4(%arg0: i32, %arg1: i32) -> (i32, i32) {
    %c0_i32 = arith.constant 0 : i32
    %c0_i32_0 = arith.constant 0 : i32
    %c0_i32_1 = arith.constant 0 : i32
    return %c0_i32, %c0_i32_0 : i32, i32
  }
  func.func @transform_5(%arg0: i32, %arg1: i32) -> (i32, i32) {
    %c0_i32 = arith.constant 0 : i32
    %c0_i32_0 = arith.constant 0 : i32
    return %c0_i32, %arg1 : i32, i32
  }
  func.func @transform_6(%arg0: i32, %arg1: i32) -> (i32, i32) {
    %c0_i32 = arith.constant 0 : i32
    %c0_i32_0 = arith.constant 0 : i32
    return %c0_i32, %arg1 : i32, i32
  }
  func.func @transform_7(%arg0: i32, %arg1: i32) -> (i32, i32) {
    %c0_i32 = arith.constant 0 : i32
    return %arg0, %arg1 : i32, i32
  }
}

</mosaic_0001>

<llo_original>
// kernel: tpu_custom_call.1
$region0: #{tpu_custom_call.1}
  #allocation0 [shape = 'u32[]', space=smem, size = 0x4, offset = 0x4, fixed_abs, tag = 'smem constant byte address 0x4 - core index']
  #allocation1 [shape = 'u32[144,128]{1,0:T(1,128)}', space=vmem, size = 0x12000, scoped, tag = 'internal scratch']
  #allocation2 [shape = 'f32[8,32]{1,0:T(8,128)}', space=vmem, size = 0x1000, scoped, tag = 'scratch operand']
  %s0 = inlined_call_operand.hbm [shape: f32[16,32], index: 0, kind: input, shape index: {}]
  %s1 = inlined_call_operand.hbm [shape: f32[32,32], index: 1, kind: input, shape index: {}]
  %s2 = inlined_call_operand.vmem [shape: f32[1,32], index: 2, kind: input, shape index: {}]
  %s3 = inlined_call_operand.vmem [shape: f32[1,32], index: 3, kind: input, shape index: {}]
  %s4 = inlined_call_operand.vmem [shape: f32[1,32], index: 4, kind: input, shape index: {}]
  %s5 = inlined_call_operand.hbm [shape: f32[32,512], index: 5, kind: input, shape index: {}]
  %s6 = inlined_call_operand.vmem [shape: f32[1,512], index: 6, kind: input, shape index: {}]
  %s7 = inlined_call_operand.hbm [shape: f32[16,512], index: 7, kind: output, shape index: {}]
  %s8 = sld [smem:[#allocation0]]
  $region77: #{tpu_custom_call.1} parent=0
    _
  %s10 = ssub.s32 1, %s8
  %s11 = scalar_select 0, %s10, %s8
  $region1: #{tpu_custom_call.1} parent=0
    #allocation3 [shape = 'u8[8192]{0}', space=vmem, size = 0x2000, scoped, tag = 'input window, operand 0']
    #allocation4 [shape = 's32[2]{0}', space=sflag, size = 0x8, scoped, tag = 'scoped memory for tpu_custom_call.1']
    #allocation5 [shape = 's32[2]{0}', space=sflag, size = 0x8, scoped, tag = 'scoped memory for tpu_custom_call.1']
    #allocation6 [shape = 'u8[16384]{0}', space=vmem, size = 0x4000, scoped, tag = 'input window, operand 1, single buffered']
    #allocation7 [shape = 's32[1]{0}', space=sflag, size = 0x4, scoped, tag = 'scoped memory for tpu_custom_call.1']
    #allocation8 [shape = 'u8[65536]{0}', space=vmem, size = 0x10000, scoped, tag = 'input window, operand 5, single buffered']
    #allocation9 [shape = 'u8[32768]{0}', space=vmem, size = 0x8000, scoped, tag = 'output window, operand 0']
    %12 = vsyncpa [#allocation4], 0
    %s13 = scalar_lea.sflag [#allocation4], 1
    %14 = vsyncpa %s13, 0
    %15 = vsyncpa [#allocation7], 0
    %16 = vsyncpa [#allocation5], 0
    %s17 = scalar_lea.sflag [#allocation5], 1
    %18 = vsyncpa %s17, 0
    loop: start=0, step=1, limit=4
    $region2: #{tpu_custom_call.1} parent=1 // loop_pre_header
      _
    $region3: #{tpu_custom_call.1} parent=1 // loop_header
      %s20 = sphi 0, %s24
      %p21 = scmp.ge.s32.totalorder %s20, 4
      %s27 = sphi 0, %s39
      %s28 = sphi 0, %s35
      %s29 = sphi 0, %s27
      %s30 = sphi 0, %s28
      %s31 = sphi 0, %s29
      %s32 = sphi 0, %s30
      %s42 = sphi 0, %s44
      %s45 = sphi 0, %s42
      %s46 = sphi 0, %s45
      %s62 = sphi 0, %s46
      %s66 = sphi 0, %s66
      %s68 = sphi 0, %s66
      %s69 = sphi 0, %s68
      %s83 = sphi 0, %s69
      %s87 = sphi 0, %s87
      %s89 = sphi 0, %s87
      %s90 = sphi 0, %s89
      %s104 = sphi 0, %s90
      %s108 = sphi 0, %s108
      %s110 = sphi 0, %s108
      %s111 = sphi 0, %s110
      %s125 = sphi 0, %s111
      %s129 = sphi 0, %s129
      %s131 = sphi 0, %s129
      %s132 = sphi 0, %s131
      %s146 = sphi 0, %s132
      %s152 = sphi 0, %s154
      %s155 = sphi 0, %s152
      %s156 = sphi 0, %s155
      %s172 = sphi 0, %s156
      %s178 = sphi 0, %s180
      %s181 = sphi 0, %s178
      %s182 = sphi 0, %s181
      %s198 = sphi 0, %s182
      %s206 = sphi 0, %s208
      %s209 = sphi 0, %s206
      %s210 = sphi 0, %s209
      %s226 = sphi 0, %s210
    $region4: #{tpu_custom_call.1} parent=1 // loop_header_branch
      %23 = sbr.rel (%p21) target = $region8
    $region5: #{tpu_custom_call.1} parent=1 // loop_body
      %s25 = ssub.s32 %s20, 1
      %s26 = ssub.s32 %s20, 2
      %s33 = sadd.s32 1, %s28
      %p34 = scmp.ge.s32.totalorder %s33, 1
      %s35 = scalar_select %p34, 0, %s33
      %s36 = sadd.s32 1, %s27
      %s37 = scalar_select %p34, %s36, %s27
      %p38 = scmp.ge.s32.totalorder %s37, 2
      %s39 = scalar_select %p38, 0, %s37
      %s40 = ssub.s32 %s27, %s39
      %p41 = scmp.eq.s32.totalorder %s40, 0
      %s43 = sadd.s32 %s42, 1
      %s44 = scalar_select %p41, %s42, %s43
      %p47 = pneg %p41
      %p48 = scmp.eq.s32.totalorder %s20, 1
      %p49 = por %p47, %p48
      %p50 = scmp.ne.s32.totalorder %s42, %s45
      %p51 = scmp.eq.s32.totalorder %s20, 0
      %p52 = por %p50, %p51
      %p53 = scmp.ne.s32.totalorder %s42, %s45
      %p54 = scmp.eq.s32.totalorder %s25, 1
      %p55 = por %p53, %p54
      %p56 = scmp.ne.s32.totalorder %s45, %s46
      %p57 = scmp.eq.s32.totalorder %s25, 0
      %p58 = por %p56, %p57
      %p59 = scmp.ne.s32.totalorder %s45, %s46
      %p60 = scmp.eq.s32.totalorder %s26, 1
      %p61 = por %p59, %p60
      %p63 = scmp.ne.s32.totalorder %s46, %s62
      %p64 = scmp.eq.s32.totalorder %s26, 0
      %p65 = por %p63, %p64
      %s67 = sadd.s32 %s66, 1
      %p70 = scmp.eq.s32.totalorder %s20, 1
      %p71 = scmp.ne.s32.totalorder %s66, %s68
      %p72 = scmp.eq.s32.totalorder %s20, 0
      %p73 = por %p71, %p72
      %p74 = scmp.ne.s32.totalorder %s66, %s68
      %p75 = scmp.eq.s32.totalorder %s25, 1
      %p76 = por %p74, %p75
      %p77 = scmp.ne.s32.totalorder %s68, %s69
      %p78 = scmp.eq.s32.totalorder %s25, 0
      %p79 = por %p77, %p78
      %p80 = scmp.ne.s32.totalorder %s68, %s69
      %p81 = scmp.eq.s32.totalorder %s26, 1
      %p82 = por %p80, %p81
      %p84 = scmp.ne.s32.totalorder %s69, %s83
      %p85 = scmp.eq.s32.totalorder %s26, 0
      %p86 = por %p84, %p85
      %s88 = sadd.s32 %s87, 1
      %p91 = scmp.eq.s32.totalorder %s20, 1
      %p92 = scmp.ne.s32.totalorder %s87, %s89
      %p93 = scmp.eq.s32.totalorder %s20, 0
      %p94 = por %p92, %p93
      %p95 = scmp.ne.s32.totalorder %s87, %s89
      %p96 = scmp.eq.s32.totalorder %s25, 1
      %p97 = por %p95, %p96
      %p98 = scmp.ne.s32.totalorder %s89, %s90
      %p99 = scmp.eq.s32.totalorder %s25, 0
      %p100 = por %p98, %p99
      %p101 = scmp.ne.s32.totalorder %s89, %s90
      %p102 = scmp.eq.s32.totalorder %s26, 1
      %p103 = por %p101, %p102
      %p105 = scmp.ne.s32.totalorder %s90, %s104
      %p106 = scmp.eq.s32.totalorder %s26, 0
      %p107 = por %p105, %p106
      %s109 = sadd.s32 %s108, 1
      %p112 = scmp.eq.s32.totalorder %s20, 1
      %p113 = scmp.ne.s32.totalorder %s108, %s110
      %p114 = scmp.eq.s32.totalorder %s20, 0
      %p115 = por %p113, %p114
      %p116 = scmp.ne.s32.totalorder %s108, %s110
      %p117 = scmp.eq.s32.totalorder %s25, 1
      %p118 = por %p116, %p117
      %p119 = scmp.ne.s32.totalorder %s110, %s111
      %p120 = scmp.eq.s32.totalorder %s25, 0
      %p121 = por %p119, %p120
      %p122 = scmp.ne.s32.totalorder %s110, %s111
      %p123 = scmp.eq.s32.totalorder %s26, 1
      %p124 = por %p122, %p123
      %p126 = scmp.ne.s32.totalorder %s111, %s125
      %p127 = scmp.eq.s32.totalorder %s26, 0
      %p128 = por %p126, %p127
      %s130 = sadd.s32 %s129, 1
      %p133 = scmp.eq.s32.totalorder %s20, 1
      %p134 = scmp.ne.s32.totalorder %s129, %s131
      %p135 = scmp.eq.s32.totalorder %s20, 0
      %p136 = por %p134, %p135
      %p137 = scmp.ne.s32.totalorder %s129, %s131
      %p138 = scmp.eq.s32.totalorder %s25, 1
      %p139 = por %p137, %p138
      %p140 = scmp.ne.s32.totalorder %s131, %s132
      %p141 = scmp.eq.s32.totalorder %s25, 0
      %p142 = por %p140, %p141
      %p143 = scmp.ne.s32.totalorder %s131, %s132
      %p144 = scmp.eq.s32.totalorder %s26, 1
      %p145 = por %p143, %p144
      %p147 = scmp.ne.s32.totalorder %s132, %s146
      %p148 = scmp.eq.s32.totalorder %s26, 0
      %p149 = por %p147, %p148
      %s150 = ssub.s32 %s28, %s35
      %p151 = scmp.eq.s32.totalorder %s150, 0
      %s153 = sadd.s32 %s152, 1
      %s154 = scalar_select %p151, %s152, %s153
      %p157 = pneg %p151
      %p158 = scmp.eq.s32.totalorder %s20, 1
      %p159 = por %p157, %p158
      %p160 = scmp.ne.s32.totalorder %s152, %s155
      %p161 = scmp.eq.s32.totalorder %s20, 0
      %p162 = por %p160, %p161
      %p163 = scmp.ne.s32.totalorder %s152, %s155
      %p164 = scmp.eq.s32.totalorder %s25, 1
      %p165 = por %p163, %p164
      %p166 = scmp.ne.s32.totalorder %s155, %s156
      %p167 = scmp.eq.s32.totalorder %s25, 0
      %p168 = por %p166, %p167
      %p169 = scmp.ne.s32.totalorder %s155, %s156
      %p170 = scmp.eq.s32.totalorder %s26, 1
      %p171 = por %p169, %p170
      %p173 = scmp.ne.s32.totalorder %s156, %s172
      %p174 = scmp.eq.s32.totalorder %s26, 0
      %p175 = por %p173, %p174
      %s176 = ssub.s32 %s28, %s35
      %p177 = scmp.eq.s32.totalorder %s176, 0
      %s179 = sadd.s32 %s178, 1
      %s180 = scalar_select %p177, %s178, %s179
      %p183 = pneg %p177
      %p184 = scmp.eq.s32.totalorder %s20, 1
      %p185 = por %p183, %p184
      %p186 = scmp.ne.s32.totalorder %s178, %s181
      %p187 = scmp.eq.s32.totalorder %s20, 0
      %p188 = por %p186, %p187
      %p189 = scmp.ne.s32.totalorder %s178, %s181
      %p190 = scmp.eq.s32.totalorder %s25, 1
      %p191 = por %p189, %p190
      %p192 = scmp.ne.s32.totalorder %s181, %s182
      %p193 = scmp.eq.s32.totalorder %s25, 0
      %p194 = por %p192, %p193
      %p195 = scmp.ne.s32.totalorder %s181, %s182
      %p196 = scmp.eq.s32.totalorder %s26, 1
      %p197 = por %p195, %p196
      %p199 = scmp.ne.s32.totalorder %s182, %s198
      %p200 = scmp.eq.s32.totalorder %s26, 0
      %p201 = por %p199, %p200
      %s202 = ssub.s32 %s27, %s39
      %s203 = ssub.s32 %s28, %s35
      %s204 = sor.u32 %s202, %s203
      %p205 = scmp.eq.s32.totalorder %s204, 0
      %s207 = sadd.s32 %s206, 1
      %s208 = scalar_select %p205, %s206, %s207
      %p211 = pneg %p205
      %p212 = scmp.eq.s32.totalorder %s20, 1
      %p213 = por %p211, %p212
      %p214 = scmp.ne.s32.totalorder %s206, %s209
      %p215 = scmp.eq.s32.totalorder %s20, 0
      %p216 = por %p214, %p215
      %p217 = scmp.ne.s32.totalorder %s206, %s209
      %p218 = scmp.eq.s32.totalorder %s25, 1
      %p219 = por %p217, %p218
      %p220 = scmp.ne.s32.totalorder %s209, %s210
      %p221 = scmp.eq.s32.totalorder %s25, 0
      %p222 = por %p220, %p221
      %p223 = scmp.ne.s32.totalorder %s209, %s210
      %p224 = scmp.eq.s32.totalorder %s26, 1
      %p225 = por %p223, %p224
      %p227 = scmp.ne.s32.totalorder %s210, %s226
      %p228 = scmp.eq.s32.totalorder %s26, 0
      %p229 = por %p227, %p228
      %p230 = scmp.le.s32.totalorder 1, %s20
      %p231 = scmp.lt.s32.totalorder %s20, 3
      %p232 = pnand %p230, %p231
      %p233 = pneg %p232
      // Predicated region
      $region9: #{tpu_custom_call.1} parent=5 // pred_check
        _
      $region10: #{tpu_custom_call.1} parent=5 // pred_check_branch
        %235 = sbr.rel (%p232) target = $region12
      $region11: #{tpu_custom_call.1} parent=5 // pred_region
        %s236 = ssub.s32 %s20, 1
        // Predicated region
        $region13: #{tpu_custom_call.1} parent=11 // pred_check
          %p237 = pneg %p79
        $region14: #{tpu_custom_call.1} parent=11 // pred_check_branch
          %239 = sbr.rel (%p237) target = $region16
        $region15: #{tpu_custom_call.1} parent=11 // pred_region
          %s241 = ssub.s32 512, 512
          %242 = vsyncadd [#allocation7], %s241
          %s243 = sshll.u32 [#allocation6], 4
          %s244 = int_to_ptr.vmem [resolvable:$true] %s243
          %249 = dma.hbm_to_vmem [thread:$0]  %s1, 512, %s244, [#allocation7], 128, 128, 8
        $region16: #{tpu_custom_call.1} parent=11 // pred_fallthru
          _
        // Predicated region
        $region17: #{tpu_custom_call.1} parent=11 // pred_check
          %p250 = pneg %p100
        $region18: #{tpu_custom_call.1} parent=11 // pred_check_branch
          %252 = sbr.rel (%p250) target = $region20
        $region19: #{tpu_custom_call.1} parent=11 // pred_region
          _
        $region20: #{tpu_custom_call.1} parent=11 // pred_fallthru
          _
        // Predicated region
        $region21: #{tpu_custom_call.1} parent=11 // pred_check
          %p253 = pneg %p121
        $region22: #{tpu_custom_call.1} parent=11 // pred_check_branch
          %255 = sbr.rel (%p253) target = $region24
        $region23: #{tpu_custom_call.1} parent=11 // pred_region
          _
        $region24: #{tpu_custom_call.1} parent=11 // pred_fallthru
          _
        // Predicated region
        $region25: #{tpu_custom_call.1} parent=11 // pred_check
          %p256 = pneg %p142
        $region26: #{tpu_custom_call.1} parent=11 // pred_check_branch
          %258 = sbr.rel (%p256) target = $region28
        $region27: #{tpu_custom_call.1} parent=11 // pred_region
          _
        $region28: #{tpu_custom_call.1} parent=11 // pred_fallthru
          _
        // Predicated region
        $region29: #{tpu_custom_call.1} parent=11 // pred_check
          %p259 = pneg %p168
        $region30: #{tpu_custom_call.1} parent=11 // pred_check_branch
          %261 = sbr.rel (%p259) target = $region32
        $region31: #{tpu_custom_call.1} parent=11 // pred_region
          %s262 = smul.u32 4, %s30
          %s264 = ssub.s32 2048, 2048
          %265 = vsyncadd [#allocation7], %s264
          %s266 = smul.addr %s262, 128
          %s267 = scalar_lea.hbm %s5, %s266
          %s268 = sshll.u32 [#allocation8], 4
          %s269 = int_to_ptr.vmem [resolvable:$true] %s268
          %274 = dma.hbm_to_vmem [thread:$0]  %s267, 2048, %s269, [#allocation7], 512, 512, 32
        $region32: #{tpu_custom_call.1} parent=11 // pred_fallthru
          _
        // Predicated region
        $region33: #{tpu_custom_call.1} parent=11 // pred_check
          %p275 = pneg %p194
        $region34: #{tpu_custom_call.1} parent=11 // pred_check_branch
          %277 = sbr.rel (%p275) target = $region36
        $region35: #{tpu_custom_call.1} parent=11 // pred_region
          %s278 = smul.u32 4, %s30
          %p279 = scmp.lt.s32.totalorder %s278, 3
          %s280 = scalar_select %p279, %s278, 3
          %s281 = scalar_lea.vmem %s6, %s280
          %s282 = smul.u32 4, %s30
        $region36: #{tpu_custom_call.1} parent=11 // pred_fallthru
          _
      $region12: #{tpu_custom_call.1} parent=5 // pred_fallthru
        _
      %p283 = scmp.lt.s32.totalorder %s20, 2
      // Predicated region
      $region37: #{tpu_custom_call.1} parent=5 // pred_check
        %p284 = pneg %p283
      $region38: #{tpu_custom_call.1} parent=5 // pred_check_branch
        %286 = sbr.rel (%p284) target = $region40
      $region39: #{tpu_custom_call.1} parent=5 // pred_region
        // Predicated region
        $region41: #{tpu_custom_call.1} parent=39 // pred_check
          %p287 = pneg %p52
        $region42: #{tpu_custom_call.1} parent=39 // pred_check_branch
          %289 = sbr.rel (%p287) target = $region44
        $region43: #{tpu_custom_call.1} parent=39 // pred_region
          %s290 = sand.u32 %s42, 1
          %s291 = scalar_lea.sflag [#allocation4], %s290
          %s292 = sand.u32 %s42, 1
          %s293 = smul.addr %s292, 8
          %s294 = scalar_lea.vmem [#allocation3], %s293
          %s296 = ssub.s32 128, 128
          %297 = vsyncadd %s291, %s296
          %s298 = smul.addr %s27, 128
          %s299 = scalar_lea.hbm %s0, %s298
          %s301 = sshll.u32 %s294, 4
          %s302 = int_to_ptr.vmem [resolvable:$true] %s301
          %304 = dma.hbm_to_vmem [thread:$0]  %s299, 128, %s302, %s291
        $region44: #{tpu_custom_call.1} parent=39 // pred_fallthru
          _
      $region40: #{tpu_custom_call.1} parent=5 // pred_fallthru
        _
      %p305 = scmp.le.s32.totalorder 1, %s20
      %p306 = scmp.lt.s32.totalorder %s20, 3
      %p307 = pnand %p305, %p306
      %p308 = pneg %p307
      // Predicated region
      $region45: #{tpu_custom_call.1} parent=5 // pred_check
        _
      $region46: #{tpu_custom_call.1} parent=5 // pred_check_branch
        %310 = sbr.rel (%p307) target = $region48
      $region47: #{tpu_custom_call.1} parent=5 // pred_region
        %s311 = ssub.s32 %s20, 1
        %s312 = sand.u32 %s45, 1
        %s313 = scalar_lea.sflag [#allocation4], %s312
        %s314 = sand.u32 %s45, 1
        %s315 = smul.addr %s314, 8
        %s316 = scalar_lea.vmem [#allocation3], %s315
        // Predicated region
        $region49: #{tpu_custom_call.1} parent=47 // pred_check
          %p317 = pneg %p58
        $region50: #{tpu_custom_call.1} parent=47 // pred_check_branch
          %319 = sbr.rel (%p317) target = $region52
        $region51: #{tpu_custom_call.1} parent=47 // pred_region
          %320 = dma.done %s313, 128
        $region52: #{tpu_custom_call.1} parent=47 // pred_fallthru
          _
        // Predicated region
        $region53: #{tpu_custom_call.1} parent=47 // pred_check
          %p321 = pneg %p79
        $region54: #{tpu_custom_call.1} parent=47 // pred_check_branch
          %323 = sbr.rel (%p321) target = $region56
        $region55: #{tpu_custom_call.1} parent=47 // pred_region
          %324 = dma.done [#allocation7], 512
        $region56: #{tpu_custom_call.1} parent=47 // pred_fallthru
          _
        // Predicated region
        $region57: #{tpu_custom_call.1} parent=47 // pred_check
          %p325 = pneg %p168
        $region58: #{tpu_custom_call.1} parent=47 // pred_check_branch
          %327 = sbr.rel (%p325) target = $region60
        $region59: #{tpu_custom_call.1} parent=47 // pred_region
          %328 = dma.done [#allocation7], 2048
        $region60: #{tpu_custom_call.1} parent=47 // pred_fallthru
          _
        %s329 = sand.u32 %s45, 1
        %s330 = scalar_lea.sflag [#allocation4], %s329
        %s331 = sand.u32 %s45, 1
        %s332 = smul.addr %s331, 8
        %s333 = scalar_lea.vmem [#allocation3], %s332
        %p334 = pneg %p58
        %p335 = pneg %p55
        %p336 = pneg %p79
        %p337 = pneg %p76
        %p338 = pneg %p100
        %p339 = pneg %p97
        %p340 = pneg %p121
        %p341 = pneg %p118
        %p342 = pneg %p142
        %p343 = pneg %p139
        %p344 = pneg %p168
        %p345 = pneg %p165
        %s346 = smul.u32 4, %s30
        %p347 = scmp.lt.s32.totalorder %s346, 3
        %s348 = scalar_select %p347, %s346, 3
        %s349 = scalar_lea.vmem %s6, %s348
        %p350 = pneg %p194
        %p351 = pneg %p191
        %p352 = pneg %p222
        %p353 = pneg %p219
        %s354 = sand.u32 %s209, 1
        %s355 = scalar_lea.sflag [#allocation5], %s354
        %s356 = sand.u32 %s209, 1
        %s357 = smul.addr %s356, 32
        %s358 = scalar_lea.vmem [#allocation9], %s357
        %s359 = smul.u32 4, %s30
        %s360 = smul.u32 4, %s30
        %p361 = scmp.lt.s32.totalorder %s360, 3
        %s362 = scalar_select %p361, %s360, 3
        %s363 = scalar_lea.vmem %s6, %s362
        %s364 = smul.u32 4, %s30
        %s365 = smul.u32 4, %s30
        %p366 = scmp.eq.s32.totalorder %s30, 0
        // Predicated region
        $region61: #{tpu_custom_call.1} parent=47 // pred_check
          %p367 = pneg %p366
        $region62: #{tpu_custom_call.1} parent=47 // pred_check_branch
          %369 = sbr.rel (%p367) target = $region64
        $region63: #{tpu_custom_call.1} parent=47 // pred_region
          %v370 = vld [vmem:[%s316] sm:$0xff]
          %v371 = vld [vmem:[#allocation6] sm:$0xff]
          %v372 = vld [vmem:[#allocation6 + $0x8] sm:$0xff]
          %v373 = vld [vmem:[#allocation6 + $0x10] sm:$0xff]
          %v374 = vld [vmem:[#allocation6 + $0x18] sm:$0xff]
          %v375 = vld [vmem:[%s2] sm:$0x1]
          %v377 = vlaneseq
          %v378 = vshrl.u32 %v377, 7
          %v379 = vsub.s32 0, %v378
          %v380 = vrot.slane %v375, %v379
          %vm382 = vcmask 261120
          %v384 = vsel %vm382, %v370, 0
          %386 = vmatprep.subr.mxu0 0.0
          %387 = vmatpush1.msra.mxu0 %v371
          %388 = vmatprep.subr.mxu0 0.0
          %389 = vmatpush1.msra.mxu0 %v372
          %390 = vmatprep.subr.mxu0 0.0
          %391 = vmatpush1.msra.mxu0 %v373
          %392 = vmatprep.subr.mxu0 0.0
          %393 = vmatpush1.msra.mxu0 %v374
          %394 = vmatprep.subr.mxu0 0.0
          %395 = vmatpush1.msra.mxu0 0.0
          %396 = vmatprep.subr.mxu0 0.0
          %397 = vmatpush1.msra.mxu0 0.0
          %398 = vmatprep.subr.mxu0 0.0
          %399 = vmatpush1.msra.mxu0 0.0
          %400 = vmatprep.subr.mxu0 0.0
          %401 = vmatpush1.msra.mxu0 0.0
          %402 = vmatprep.subr.mxu0 0.0
          %403 = vmatpush1.msra.mxu0 0.0
          %404 = vmatprep.subr.mxu0 0.0
          %405 = vmatpush1.msra.mxu0 0.0
          %406 = vmatprep.subr.mxu0 0.0
          %407 = vmatpush1.msra.mxu0 0.0
          %408 = vmatprep.subr.mxu0 0.0
          %409 = vmatpush1.msra.mxu0 0.0
          %410 = vmatprep.subr.mxu0 0.0
          %411 = vmatpush1.msra.mxu0 0.0
          %412 = vmatprep.subr.mxu0 0.0
          %413 = vmatpush1.msra.mxu0 0.0
          %414 = vmatprep.subr.mxu0 0.0
          %415 = vmatpush1.msra.mxu0 0.0
          %416 = vmatprep.subr.mxu0 0.0
          %417 = vmatpush1.msra.mxu0 0.0
          %418 = vmatprep.subr.mxu0 0.0
          %419 = vmatpush1.msra.mxu0 0.0
          %420 = vmatprep.subr.mxu0 0.0
          %421 = vmatpush1.msra.mxu0 0.0
          %422 = vmatprep.subr.mxu0 0.0
          %423 = vmatpush1.msra.mxu0 0.0
          %424 = vmatprep.subr.mxu0 0.0
          %425 = vmatpush1.msra.mxu0 0.0
          %426 = vmatprep.subr.mxu0 0.0
          %427 = vmatpush1.msra.mxu0 0.0
          %428 = vmatprep.subr.mxu0 0.0
          %429 = vmatpush1.msra.mxu0 0.0
          %430 = vmatprep.subr.mxu0 0.0
          %431 = vmatpush1.msra.mxu0 0.0
          %432 = vmatprep.subr.mxu0 0.0
          %433 = vmatpush1.msra.mxu0 0.0
          %434 = vmatprep.subr.mxu0 0.0
          %435 = vmatpush1.msra.mxu0 0.0
          %436 = vmatprep.subr.mxu0 0.0
          %437 = vmatpush1.msra.mxu0 0.0
          %438 = vmatprep.subr.mxu0 0.0
          %439 = vmatpush1.msra.mxu0 0.0
          %440 = vmatprep.subr.mxu0 0.0
          %441 = vmatpush1.msra.mxu0 0.0
          %442 = vmatprep.subr.mxu0 0.0
          %443 = vmatpush1.msra.mxu0 0.0
          %444 = vmatprep.subr.mxu0 0.0
          %445 = vmatpush1.msra.mxu0 0.0
          %446 = vmatprep.subr.mxu0 0.0
          %447 = vmatpush1.msra.mxu0 0.0
          %448 = vmatprep.subr.mxu0 0.0
          %449 = vmatpush1.msra.mxu0 0.0
          %450 = vmatprep.mubr.f32.mxu0 0.0
          %451 = vmatmul.mubr.f32.gmra.mrb[0].mxu0 %v384
          %v452 = vpop.f32.mrb[0].mxu0
          %v453 = vadd.f32 %v380, %v452
          %v454 = vpop.f32.mrb[0].mxu0
          %455 = vdwg.mxu0
          %v456 = vmul.f32 %v453, 0.5
          %v457 = vmul.f32 %v453, 0.70710677
          %v458 = verf.f32.pop %v457
          %v459 = vadd.f32 %v458, 1.0
          %v460 = vmul.f32 %v456, %v459
          %v461 = vsel %vm382, %v460, 0.0
          %462 = vadd.xlane.f32.xlu0 %v461
          %v463 = vpop.xlane.xlu0 %462
          %v464 = vrcp.pop 32.0
          %v465 = vmul.f32 %v463, %v464
          %v466 = vsub.f32 %v460, %v465
          %v467 = vmul.f32 %v466, %v466
          %v468 = vsel %vm382, %v467, 0.0
          %469 = vadd.xlane.f32.xlu0 %v468
          %v470 = vpop.xlane.xlu0 %469
          %v471 = vmul.f32 %v470, %v464
          %v472 = vadd.f32 %v471, 1e-12
          %v473 = vrsqrt.pop %v472
          %v474 = vmul.f32 %v466, %v473
          %v475 = vld [vmem:[%s3] sm:$0x1]
          %v477 = vlaneseq
          %v478 = vshrl.u32 %v477, 7
          %v479 = vsub.s32 0, %v478
          %v480 = vrot.slane %v475, %v479
          %v482 = vmul.f32 %v474, %v480
          %v483 = vld [vmem:[%s4] sm:$0x1]
          %v485 = vlaneseq
          %v486 = vshrl.u32 %v485, 7
          %v487 = vsub.s32 0, %v486
          %v488 = vrot.slane %v483, %v487
          %v490 = vadd.f32 %v482, %v488
          %491 = vst.msk [vmem:[#allocation2] sm:$0xff] %vm382, %v490
        $region64: #{tpu_custom_call.1} parent=47 // pred_fallthru
          _
        %v492 = vld [vmem:[#allocation2] sm:$0xff]
        %v493 = vld [vmem:[#allocation8] sm:$0xff]
        %v494 = vld [vmem:[#allocation8 + $0x8] sm:$0xff]
        %v495 = vld [vmem:[#allocation8 + $0x10] sm:$0xff]
        %v496 = vld [vmem:[#allocation8 + $0x18] sm:$0xff]
        %v497 = vld [vmem:[#allocation8 + $0x20] sm:$0xff]
        %v498 = vld [vmem:[#allocation8 + $0x28] sm:$0xff]
        %v499 = vld [vmem:[#allocation8 + $0x30] sm:$0xff]
        %v500 = vld [vmem:[#allocation8 + $0x38] sm:$0xff]
        %v501 = vld [vmem:[#allocation8 + $0x40] sm:$0xff]
        %v502 = vld [vmem:[#allocation8 + $0x48] sm:$0xff]
        %v503 = vld [vmem:[#allocation8 + $0x50] sm:$0xff]
        %v504 = vld [vmem:[#allocation8 + $0x58] sm:$0xff]
        %v505 = vld [vmem:[#allocation8 + $0x60] sm:$0xff]
        %v506 = vld [vmem:[#allocation8 + $0x68] sm:$0xff]
        %v507 = vld [vmem:[#allocation8 + $0x70] sm:$0xff]
        %v508 = vld [vmem:[#allocation8 + $0x78] sm:$0xff]
        %v509 = vld [vmem:[%s363] sm:$0xf]
        %v511 = vlaneseq
        %v512 = vshrl.u32 %v511, 7
        %v513 = vsub.s32 0, %v512
        %v514 = vrot.slane %v509, %v513
        %v515 = vlaneseq
        %v516 = vshrl.u32 %v515, 7
        %v517 = vsub.s32 1, %v516
        %v518 = vrot.slane %v509, %v517
        %v519 = vlaneseq
        %v520 = vshrl.u32 %v519, 7
        %v521 = vsub.s32 2, %v520
        %v522 = vrot.slane %v509, %v521
        %v523 = vlaneseq
        %v524 = vshrl.u32 %v523, 7
        %v525 = vsub.s32 3, %v524
        %v526 = vrot.slane %v509, %v525
        %vm531 = vcmask 261120
        %v533 = vsel %vm531, %v492, 0
        %535 = vmatprep.subr.mxu0 %v494
        %536 = vmatpush1.msra.mxu0 %v493
        %537 = vmatprep.subr.mxu0 %v498
        %538 = vmatpush1.msra.mxu0 %v497
        %539 = vmatprep.subr.mxu0 %v502
        %540 = vmatpush1.msra.mxu0 %v501
        %541 = vmatprep.subr.mxu0 %v506
        %542 = vmatpush1.msra.mxu0 %v505
        %543 = vmatprep.subr.mxu0 0.0
        %544 = vmatpush1.msra.mxu0 0.0
        %545 = vmatprep.subr.mxu0 0.0
        %546 = vmatpush1.msra.mxu0 0.0
        %547 = vmatprep.subr.mxu0 0.0
        %548 = vmatpush1.msra.mxu0 0.0
        %549 = vmatprep.subr.mxu0 0.0
        %550 = vmatpush1.msra.mxu0 0.0
        %551 = vmatprep.subr.mxu0 0.0
        %552 = vmatpush1.msra.mxu0 0.0
        %553 = vmatprep.subr.mxu0 0.0
        %554 = vmatpush1.msra.mxu0 0.0
        %555 = vmatprep.subr.mxu0 0.0
        %556 = vmatpush1.msra.mxu0 0.0
        %557 = vmatprep.subr.mxu0 0.0
        %558 = vmatpush1.msra.mxu0 0.0
        %559 = vmatprep.subr.mxu0 0.0
        %560 = vmatpush1.msra.mxu0 0.0
        %561 = vmatprep.subr.mxu0 0.0
        %562 = vmatpush1.msra.mxu0 0.0
        %563 = vmatprep.subr.mxu0 0.0
        %564 = vmatpush1.msra.mxu0 0.0
        %565 = vmatprep.subr.mxu0 0.0
        %566 = vmatpush1.msra.mxu0 0.0
        %567 = vmatprep.subr.mxu0 0.0
        %568 = vmatpush1.msra.mxu0 0.0
        %569 = vmatprep.subr.mxu0 0.0
        %570 = vmatpush1.msra.mxu0 0.0
        %571 = vmatprep.subr.mxu0 0.0
        %572 = vmatpush1.msra.mxu0 0.0
        %573 = vmatprep.subr.mxu0 0.0
        %574 = vmatpush1.msra.mxu0 0.0
        %575 = vmatprep.subr.mxu0 0.0
        %576 = vmatpush1.msra.mxu0 0.0
        %577 = vmatprep.subr.mxu0 0.0
        %578 = vmatpush1.msra.mxu0 0.0
        %579 = vmatprep.subr.mxu0 0.0
        %580 = vmatpush1.msra.mxu0 0.0
        %581 = vmatprep.subr.mxu0 0.0
        %582 = vmatpush1.msra.mxu0 0.0
        %583 = vmatprep.subr.mxu0 0.0
        %584 = vmatpush1.msra.mxu0 0.0
        %585 = vmatprep.subr.mxu0 0.0
        %586 = vmatpush1.msra.mxu0 0.0
        %587 = vmatprep.subr.mxu0 0.0
        %588 = vmatpush1.msra.mxu0 0.0
        %589 = vmatprep.subr.mxu0 0.0
        %590 = vmatpush1.msra.mxu0 0.0
        %591 = vmatprep.subr.mxu0 0.0
        %592 = vmatpush1.msra.mxu0 0.0
        %593 = vmatprep.subr.mxu0 0.0
        %594 = vmatpush1.msra.mxu0 0.0
        %595 = vmatprep.subr.mxu0 0.0
        %596 = vmatpush1.msra.mxu0 0.0
        %597 = vmatprep.subr.mxu0 0.0
        %598 = vmatpush1.msra.mxu0 0.0
        %599 = vmatprep.mubr.f32.mxu0 0.0
        %600 = vmatmul.mubr.f32.gmra.mrb[0].mxu0 %v533
        %v601 = vpop.f32.mrb[0].mxu0
        %v602 = vadd.f32 %v514, %v601
        %v603 = vpop.f32.mrb[0].mxu0
        %v604 = vadd.f32 %v518, %v603
        %605 = vdwg.mxu0
        %606 = vmatprep.subr.mxu0 %v496
        %607 = vmatpush1.msra.mxu0 %v495
        %608 = vmatprep.subr.mxu0 %v500
        %609 = vmatpush1.msra.mxu0 %v499
        %610 = vmatprep.subr.mxu0 %v504
        %611 = vmatpush1.msra.mxu0 %v503
        %612 = vmatprep.subr.mxu0 %v508
        %613 = vmatpush1.msra.mxu0 %v507
        %614 = vmatprep.subr.mxu0 0.0
        %615 = vmatpush1.msra.mxu0 0.0
        %616 = vmatprep.subr.mxu0 0.0
        %617 = vmatpush1.msra.mxu0 0.0
        %618 = vmatprep.subr.mxu0 0.0
        %619 = vmatpush1.msra.mxu0 0.0
        %620 = vmatprep.subr.mxu0 0.0
        %621 = vmatpush1.msra.mxu0 0.0
        %622 = vmatprep.subr.mxu0 0.0
        %623 = vmatpush1.msra.mxu0 0.0
        %624 = vmatprep.subr.mxu0 0.0
        %625 = vmatpush1.msra.mxu0 0.0
        %626 = vmatprep.subr.mxu0 0.0
        %627 = vmatpush1.msra.mxu0 0.0
        %628 = vmatprep.subr.mxu0 0.0
        %629 = vmatpush1.msra.mxu0 0.0
        %630 = vmatprep.subr.mxu0 0.0
        %631 = vmatpush1.msra.mxu0 0.0
        %632 = vmatprep.subr.mxu0 0.0
        %633 = vmatpush1.msra.mxu0 0.0
        %634 = vmatprep.subr.mxu0 0.0
        %635 = vmatpush1.msra.mxu0 0.0
        %636 = vmatprep.subr.mxu0 0.0
        %637 = vmatpush1.msra.mxu0 0.0
        %638 = vmatprep.subr.mxu0 0.0
        %639 = vmatpush1.msra.mxu0 0.0
        %640 = vmatprep.subr.mxu0 0.0
        %641 = vmatpush1.msra.mxu0 0.0
        %642 = vmatprep.subr.mxu0 0.0
        %643 = vmatpush1.msra.mxu0 0.0
        %644 = vmatprep.subr.mxu0 0.0
        %645 = vmatpush1.msra.mxu0 0.0
        %646 = vmatprep.subr.mxu0 0.0
        %647 = vmatpush1.msra.mxu0 0.0
        %648 = vmatprep.subr.mxu0 0.0
        %649 = vmatpush1.msra.mxu0 0.0
        %650 = vmatprep.subr.mxu0 0.0
        %651 = vmatpush1.msra.mxu0 0.0
        %652 = vmatprep.subr.mxu0 0.0
        %653 = vmatpush1.msra.mxu0 0.0
        %654 = vmatprep.subr.mxu0 0.0
        %655 = vmatpush1.msra.mxu0 0.0
        %656 = vmatprep.subr.mxu0 0.0
        %657 = vmatpush1.msra.mxu0 0.0
        %658 = vmatprep.subr.mxu0 0.0
        %659 = vmatpush1.msra.mxu0 0.0
        %660 = vmatprep.subr.mxu0 0.0
        %661 = vmatpush1.msra.mxu0 0.0
        %662 = vmatprep.subr.mxu0 0.0
        %663 = vmatpush1.msra.mxu0 0.0
        %664 = vmatprep.subr.mxu0 0.0
        %665 = vmatpush1.msra.mxu0 0.0
        %666 = vmatprep.subr.mxu0 0.0
        %667 = vmatpush1.msra.mxu0 0.0
        %668 = vmatprep.subr.mxu0 0.0
        %669 = vmatpush1.msra.mxu0 0.0
        %670 = vmatprep.mubr.f32.mxu0 0.0
        %671 = vmatmul.mubr.f32.gmra.mrb[0].mxu0 %v533
        %v672 = vpop.f32.mrb[0].mxu0
        %v673 = vadd.f32 %v522, %v672
        %v674 = vpop.f32.mrb[0].mxu0
        %v675 = vadd.f32 %v526, %v674
        %676 = vdwg.mxu0
        %677 = vst [vmem:[%s358] sm:$0xff] %v602
        %678 = vst [vmem:[%s358 + $0x8] sm:$0xff] %v604
        %679 = vst [vmem:[%s358 + $0x10] sm:$0xff] %v673
        %680 = vst [vmem:[%s358 + $0x18] sm:$0xff] %v675
        %s681 = sand.u32 %s209, 1
        %s682 = scalar_lea.sflag [#allocation5], %s681
        %s683 = sand.u32 %s209, 1
        %s684 = smul.addr %s683, 32
        %s685 = scalar_lea.vmem [#allocation9], %s684
        // Predicated region
        $region65: #{tpu_custom_call.1} parent=47 // pred_check
          %p686 = pneg %p219
        $region66: #{tpu_custom_call.1} parent=47 // pred_check_branch
          %688 = sbr.rel (%p686) target = $region68
        $region67: #{tpu_custom_call.1} parent=47 // pred_region
          %s689 = smul.u32 4, %s30
          %s691 = ssub.s32 512, 512
          %692 = vsyncadd %s682, %s691
          %s693 = smul.addr %s29, 4
          %s694 = sadd.s32 %s689, %s693
          %s695 = smul.addr %s694, 128
          %s696 = scalar_lea.hbm %s7, %s695
          %s698 = sshll.u32 %s685, 4
          %s699 = int_to_ptr.vmem [resolvable:$true] %s698
          %701 = dma.vmem_to_hbm [thread:$0]  %s699, 512, %s696, %s682
        $region68: #{tpu_custom_call.1} parent=47 // pred_fallthru
          _
      $region48: #{tpu_custom_call.1} parent=5 // pred_fallthru
        _
      %p702 = scmp.le.s32.totalorder 2, %s20
      // Predicated region
      $region69: #{tpu_custom_call.1} parent=5 // pred_check
        %p703 = pneg %p702
      $region70: #{tpu_custom_call.1} parent=5 // pred_check_branch
        %705 = sbr.rel (%p703) target = $region72
      $region71: #{tpu_custom_call.1} parent=5 // pred_region
        %s706 = ssub.s32 %s20, 2
        // Predicated region
        $region73: #{tpu_custom_call.1} parent=71 // pred_check
          %p707 = pneg %p225
        $region74: #{tpu_custom_call.1} parent=71 // pred_check_branch
          %709 = sbr.rel (%p707) target = $region76
        $region75: #{tpu_custom_call.1} parent=71 // pred_region
          %s710 = sand.u32 %s210, 1
          %s711 = scalar_lea.sflag [#allocation5], %s710
          %s712 = sand.u32 %s210, 1
          %s713 = smul.addr %s712, 32
          %s714 = scalar_lea.vmem [#allocation9], %s713
          %715 = dma.done %s711, 512
        $region76: #{tpu_custom_call.1} parent=71 // pred_fallthru
          _
      $region72: #{tpu_custom_call.1} parent=5 // pred_fallthru
        _
    $region6: #{tpu_custom_call.1} parent=1 // loop_footer
      %s24 = sadd.s32 1, %s20
    $region7: #{tpu_custom_call.1} parent=1 // loop_footer_branch
      %19 = sbr.rel target = $region3
    $region8: #{tpu_custom_call.1} parent=1 // loop_exit
      _
    %716 = vsyncpa [#allocation4], 1
    %s717 = scalar_lea.sflag [#allocation4], 1
    %718 = vsyncpa %s717, 1
    %719 = vsyncpa [#allocation7], 1
    %720 = vsyncpa [#allocation5], 1
    %s721 = scalar_lea.sflag [#allocation5], 1
    %722 = vsyncpa %s721, 1

</llo_original>
